<compile_context>
chip_gen: v5e
topology: v5e:2x2
jax: 0.10.0
libtpu: 0.0.40
codegen_flags: <defaults>
</compile_context>

<pallas_src>
import functools

import jax
import jax.numpy as jnp
from jax.experimental import pallas as pl
from jax.experimental.pallas import tpu as pltpu


def dqn_kernel(x_ref,
               w1_ref, b1_ref,
               w2_ref, b2_ref,
               w3_ref, b3_ref,
               w4_ref, b4_ref,
               o_ref):
    # MXU operand dtype == storage dtype of the weights (f32 or bf16).
    cdt = w1_ref.dtype

    x = x_ref[...]                                                     # (TB, F*D_in)
    if x.dtype != cdt:
        x = x.astype(cdt)          # in-VMEM cast (no extra HBM traffic)

    # Elementwise math (bias add, ReLU) stays in f32 on the VPU; activations
    # are cast to the MXU operand dtype only right before each dot.
    h = jnp.dot(x, w1_ref[...], preferred_element_type=jnp.float32) + b1_ref[...]
    h = jnp.maximum(h, 0.0)                                            # (TB, F*16)

    h = jnp.dot(h.astype(cdt), w2_ref[...],
                preferred_element_type=jnp.float32) + b2_ref[...]
    h = jnp.maximum(h, 0.0)                                            # (TB, F*32)

    h = jnp.dot(h.astype(cdt), w3_ref[...],
                preferred_element_type=jnp.float32) + b3_ref[...]
    h = jnp.maximum(h, 0.0)                                            # (TB, F*16)

    out = jnp.dot(h.astype(cdt), w4_ref[...],
                  preferred_element_type=jnp.float32) + b4_ref[...]
    o_ref[...] = out.astype(o_ref.dtype)                               # (TB, F*D_out)


def _round_up(v, m):
    return -(-v // m) * m


def _choose_fold(batch, max_fold):
    """Largest power-of-two fold <= max_fold that divides the batch (no pad)."""
    f = max(1, int(max_fold))
    while f > 1 and batch % f != 0:
        f //= 2
    return f


def _block_diag(w, f):
    """(in, out) -> (f*in, f*out) block-diagonal diag(w, ..., w)."""
    if f == 1:
        return w
    din, dout = w.shape
    eye = jnp.eye(f, dtype=w.dtype)
    return jnp.einsum('ab,rc->arbc', eye, w).reshape(f * din, f * dout)


@functools.partial(jax.jit, static_argnames=("block_b", "max_fold", "param_dtype"))
def dqn_forward(x, params, *, block_b=8192, max_fold=8, param_dtype=None):
    """Fused DQN forward. x: (B, input_dim). Returns (B, output_dim) f32."""
    (w1, b1), (w2, b2), (w3, b3), (w4, b4) = params
    B, d_in = x.shape
    out_dim = w4.shape[1]

    # Optional low-precision storage for the weights only (tiny, VMEM-resident).
    # x keeps its incoming dtype: casting it here would add a full HBM pass.
    if param_dtype is not None:
        w1, w2, w3, w4 = (w.astype(param_dtype) for w in (w1, w2, w3, w4))

    # ---- batch-fold: pack F rows into lanes; block-diag weights, tiled biases.
    f = _choose_fold(B, max_fold)
    bf = B // f
    d_in_f, d_out_f = f * d_in, f * out_dim
    xf = x.reshape(bf, d_in_f)
    w1f, w2f, w3f, w4f = (_block_diag(w, f) for w in (w1, w2, w3, w4))
    b1f, b2f, b3f, b4f = (jnp.tile(b, (1, f)) for b in (b1, b2, b3, b4))

    # ---- batch tile selection.
    sub = 16 if xf.dtype == jnp.bfloat16 else 8   # sublane packing multiple
    # VMEM budget: 2 double-buffered x tiles + 2 lane-padded output tiles
    # must stay well under the 32 MiB scoped default (v7x: 64 MiB physical).
    per_row = 2 * d_in_f * xf.dtype.itemsize + 2 * max(d_out_f, 128) * 4
    vmem_cap = max(sub, ((24 << 20) // per_row) // sub * sub)
    if bf <= sub:
        tb = bf                                   # single full block
    else:
        # >= 2 grid steps when possible (v7x has 2 TCs), but keep steps big.
        tb = max(sub, min(block_b, vmem_cap, _round_up((bf + 1) // 2, sub)))

    b_pad = _round_up(bf, tb)
    if b_pad != bf:
        # TODO(synk): replace tail padding with an in-kernel masked store
        # (scalar-prefetched real length) to avoid this extra copy of x.
        xf = jnp.pad(xf, ((0, b_pad - bf), (0, 0)))
    grid = (b_pad // tb,)

    def resident(a):  # weights/biases: constant index map -> stay in VMEM
        return pl.BlockSpec(a.shape, lambda i: (0, 0))

    outf = pl.pallas_call(
        dqn_kernel,
        out_shape=jax.ShapeDtypeStruct((b_pad, d_out_f), jnp.float32),
        grid=grid,
        in_specs=[
            pl.BlockSpec((tb, d_in_f), lambda i: (i, 0)),   # x: tiled over batch
            resident(w1f), resident(b1f),
            resident(w2f), resident(b2f),
            resident(w3f), resident(b3f),
            resident(w4f), resident(b4f),
        ],
        out_specs=pl.BlockSpec((tb, d_out_f), lambda i: (i, 0)),
        compiler_params=pltpu.CompilerParams(
            dimension_semantics=("parallel",),
            vmem_limit_bytes=32 << 20),
    )(xf, w1f, b1f, w2f, b2f, w3f, b3f, w4f, b4f)

    # Un-fold: (bf, F*out) -> (B, out); row-major contiguous, so this is free.
    return outf[:bf].reshape(B, out_dim)


def init_linear(key, fan_in, fan_out):
    # Deterministic synthetic init (PyTorch-style uniform bound 1/sqrt(fan_in)).
    kw, kb = jax.random.split(key)
    bound = 1.0 / jnp.sqrt(fan_in)
    w = jax.random.uniform(kw, (fan_in, fan_out), jnp.float32, -bound, bound)
    b = jax.random.uniform(kb, (1, fan_out), jnp.float32, -bound, bound)
    return w, b


def init_dqn_params(key, input_dim, output_dim):
    k1, k2, k3, k4 = jax.random.split(key, 4)
    return (
        init_linear(k1, input_dim, 16),
        init_linear(k2, 16, 32),
        init_linear(k3, 32, 16),
        init_linear(k4, 16, output_dim),
    )


def dqn_reference(x, params, compute_dtype=None):
    """Pure-JAX reference; mirrors the kernel's precision when compute_dtype set."""
    h = x if compute_dtype is None else x.astype(compute_dtype)
    n = len(params)
    for i, (w, b) in enumerate(params):
        wd = w if compute_dtype is None else w.astype(compute_dtype)
        h = jnp.dot(h, wd, preferred_element_type=jnp.float32) + b
        if i < n - 1:
            h = jnp.maximum(h, 0.0)
            if compute_dtype is not None:
                h = h.astype(compute_dtype)
    return h


if __name__ == "__main__":
    key = jax.random.PRNGKey(0)
    k_x, k_p = jax.random.split(key)

    B, input_dim, output_dim = 64, 32, 4
    x = jax.random.normal(k_x, (B, input_dim), jnp.float32)
    params = init_dqn_params(k_p, input_dim, output_dim)

    ref_f32 = dqn_reference(x, params)

    # f32 path, fold F=8 (lane-dense 256/128/256/128/32 layer widths).
    out_f32 = jax.block_until_ready(dqn_forward(x, params))
    assert out_f32.shape == (B, output_dim)
    assert jnp.allclose(out_f32, ref_f32, atol=1e-4, rtol=1e-4), "f32 mismatch"

    # bf16-weight path (x stays f32 in HBM; cast happens in-kernel in VMEM).
    out_bf16 = jax.block_until_ready(
        dqn_forward(x, params, param_dtype=jnp.bfloat16))
    ref_bf16 = dqn_reference(x, params, compute_dtype=jnp.bfloat16)
    assert jnp.allclose(out_bf16, ref_bf16, atol=5e-3, rtol=5e-3), "bf16 mismatch"

    # Ragged batch (B=50 -> fold F=2, folded batch 25, tile 16 -> padded tail).
    out_odd = jax.block_until_ready(dqn_forward(x[:50], params))
    assert jnp.allclose(out_odd, ref_f32[:50], atol=1e-4, rtol=1e-4), "ragged mismatch"

    print("KERNEL_OK")
</pallas_src>

<mosaic_0001>
module attributes {stable_mosaic.version = 11 : i64} {
  func.func @dqn_kernel(%arg0: i32, %arg1: memref<8x256xf32, #tpu.memory_space<vmem>>, %arg2: memref<256x128xf32, #tpu.memory_space<vmem>>, %arg3: memref<1x128xf32, #tpu.memory_space<vmem>>, %arg4: memref<128x256xf32, #tpu.memory_space<vmem>>, %arg5: memref<1x256xf32, #tpu.memory_space<vmem>>, %arg6: memref<256x128xf32, #tpu.memory_space<vmem>>, %arg7: memref<1x128xf32, #tpu.memory_space<vmem>>, %arg8: memref<128x32xf32, #tpu.memory_space<vmem>>, %arg9: memref<1x32xf32, #tpu.memory_space<vmem>>, %arg10: memref<8x32xf32, #tpu.memory_space<vmem>>) attributes {dimension_semantics = [#tpu.dimension_semantics<parallel>], iteration_bounds = array<i64: 1>, scalar_prefetch = 0 : i64, scratch_operands = 0 : i64, tpu.core_type = #tpu.core_type<tc>, window_params = [{transform_indices = @transform_0, window_bounds = array<i64: 8, 256>}, {pipeline_mode = #tpu.pipeline_mode<synchronous>, transform_indices = @transform_1, window_bounds = array<i64: 256, 128>}, {pipeline_mode = #tpu.pipeline_mode<synchronous>, transform_indices = @transform_2, window_bounds = array<i64: 1, 128>}, {pipeline_mode = #tpu.pipeline_mode<synchronous>, transform_indices = @transform_3, window_bounds = array<i64: 128, 256>}, {pipeline_mode = #tpu.pipeline_mode<synchronous>, transform_indices = @transform_4, window_bounds = array<i64: 1, 256>}, {pipeline_mode = #tpu.pipeline_mode<synchronous>, transform_indices = @transform_5, window_bounds = array<i64: 256, 128>}, {pipeline_mode = #tpu.pipeline_mode<synchronous>, transform_indices = @transform_6, window_bounds = array<i64: 1, 128>}, {pipeline_mode = #tpu.pipeline_mode<synchronous>, transform_indices = @transform_7, window_bounds = array<i64: 128, 32>}, {pipeline_mode = #tpu.pipeline_mode<synchronous>, transform_indices = @transform_8, window_bounds = array<i64: 1, 32>}, {transform_indices = @transform_9, window_bounds = array<i64: 8, 32>}]} {
    %c0 = arith.constant 0 : index
    %c0_0 = arith.constant 0 : index
    %0 = vector.load %arg1[%c0, %c0_0] : memref<8x256xf32, #tpu.memory_space<vmem>>, vector<8x256xf32>
    %c0_1 = arith.constant 0 : index
    %c0_2 = arith.constant 0 : index
    %1 = vector.load %arg2[%c0_1, %c0_2] : memref<256x128xf32, #tpu.memory_space<vmem>>, vector<256x128xf32>
    %cst = arith.constant dense<0.000000e+00> : vector<8x128xf32>
    %2 = tpu.matmul %0, %1, %cst {dimension_numbers = #tpu.dot_dimension_numbers<[1], [0], [0], [1], [0, 0, 1, 1], [], []>} : vector<8x256xf32>, vector<256x128xf32>, vector<8x128xf32> -> vector<8x128xf32>
    %c0_3 = arith.constant 0 : index
    %c0_4 = arith.constant 0 : index
    %3 = vector.load %arg3[%c0_3, %c0_4] : memref<1x128xf32, #tpu.memory_space<vmem>>, vector<1x128xf32>
    %4 = vector.broadcast %3 : vector<1x128xf32> to vector<8x128xf32>
    %5 = arith.addf %2, %4 : vector<8x128xf32>
    %cst_5 = arith.constant 0.000000e+00 : f32
    %6 = vector.broadcast %cst_5 : f32 to vector<8x128xf32>
    %7 = arith.maximumf %5, %6 : vector<8x128xf32>
    %c0_6 = arith.constant 0 : index
    %c0_7 = arith.constant 0 : index
    %8 = vector.load %arg4[%c0_6, %c0_7] : memref<128x256xf32, #tpu.memory_space<vmem>>, vector<128x256xf32>
    %cst_8 = arith.constant dense<0.000000e+00> : vector<8x256xf32>
    %9 = tpu.matmul %7, %8, %cst_8 {dimension_numbers = #tpu.dot_dimension_numbers<[1], [0], [0], [1], [0, 0, 1, 1], [], []>} : vector<8x128xf32>, vector<128x256xf32>, vector<8x256xf32> -> vector<8x256xf32>
    %c0_9 = arith.constant 0 : index
    %c0_10 = arith.constant 0 : index
    %10 = vector.load %arg5[%c0_9, %c0_10] : memref<1x256xf32, #tpu.memory_space<vmem>>, vector<1x256xf32>
    %11 = vector.broadcast %10 : vector<1x256xf32> to vector<8x256xf32>
    %12 = arith.addf %9, %11 : vector<8x256xf32>
    %cst_11 = arith.constant 0.000000e+00 : f32
    %13 = vector.broadcast %cst_11 : f32 to vector<8x256xf32>
    %14 = arith.maximumf %12, %13 : vector<8x256xf32>
    %c0_12 = arith.constant 0 : index
    %c0_13 = arith.constant 0 : index
    %15 = vector.load %arg6[%c0_12, %c0_13] : memref<256x128xf32, #tpu.memory_space<vmem>>, vector<256x128xf32>
    %cst_14 = arith.constant dense<0.000000e+00> : vector<8x128xf32>
    %16 = tpu.matmul %14, %15, %cst_14 {dimension_numbers = #tpu.dot_dimension_numbers<[1], [0], [0], [1], [0, 0, 1, 1], [], []>} : vector<8x256xf32>, vector<256x128xf32>, vector<8x128xf32> -> vector<8x128xf32>
    %c0_15 = arith.constant 0 : index
    %c0_16 = arith.constant 0 : index
    %17 = vector.load %arg7[%c0_15, %c0_16] : memref<1x128xf32, #tpu.memory_space<vmem>>, vector<1x128xf32>
    %18 = vector.broadcast %17 : vector<1x128xf32> to vector<8x128xf32>
    %19 = arith.addf %16, %18 : vector<8x128xf32>
    %cst_17 = arith.constant 0.000000e+00 : f32
    %20 = vector.broadcast %cst_17 : f32 to vector<8x128xf32>
    %21 = arith.maximumf %19, %20 : vector<8x128xf32>
    %c0_18 = arith.constant 0 : index
    %c0_19 = arith.constant 0 : index
    %22 = vector.load %arg8[%c0_18, %c0_19] : memref<128x32xf32, #tpu.memory_space<vmem>>, vector<128x32xf32>
    %cst_20 = arith.constant dense<0.000000e+00> : vector<8x32xf32>
    %23 = tpu.matmul %21, %22, %cst_20 {dimension_numbers = #tpu.dot_dimension_numbers<[1], [0], [0], [1], [0, 0, 1, 1], [], []>} : vector<8x128xf32>, vector<128x32xf32>, vector<8x32xf32> -> vector<8x32xf32>
    %c0_21 = arith.constant 0 : index
    %c0_22 = arith.constant 0 : index
    %24 = vector.load %arg9[%c0_21, %c0_22] : memref<1x32xf32, #tpu.memory_space<vmem>>, vector<1x32xf32>
    %25 = vector.broadcast %24 : vector<1x32xf32> to vector<8x32xf32>
    %26 = arith.addf %23, %25 : vector<8x32xf32>
    %c0_23 = arith.constant 0 : index
    %c0_24 = arith.constant 0 : index
    %27 = vector.load %arg10[%c0_23, %c0_24] : memref<8x32xf32, #tpu.memory_space<vmem>>, vector<8x32xf32>
    tpu.vector_store %arg10[%c0_23, %c0_24], %26 {strides = array<i32>} : memref<8x32xf32, #tpu.memory_space<vmem>>, vector<8x32xf32>,
    return
  }
  func.func @transform_0(%arg0: i32) -> (i32, i32) {
    %c0_i32 = arith.constant 0 : i32
    %c0_i32_0 = arith.constant 0 : i32
    return %arg0, %c0_i32 : i32, i32
  }
  func.func @transform_1(%arg0: i32) -> (i32, i32) {
    %c0_i32 = arith.constant 0 : i32
    %c0_i32_0 = arith.constant 0 : i32
    %c0_i32_1 = arith.constant 0 : i32
    return %c0_i32, %c0_i32_0 : i32, i32
  }
  func.func @transform_2(%arg0: i32) -> (i32, i32) {
    %c0_i32 = arith.constant 0 : i32
    %c0_i32_0 = arith.constant 0 : i32
    %c0_i32_1 = arith.constant 0 : i32
    return %c0_i32, %c0_i32_0 : i32, i32
  }
  func.func @transform_3(%arg0: i32) -> (i32, i32) {
    %c0_i32 = arith.constant 0 : i32
    %c0_i32_0 = arith.constant 0 : i32
    %c0_i32_1 = arith.constant 0 : i32
    return %c0_i32, %c0_i32_0 : i32, i32
  }
  func.func @transform_4(%arg0: i32) -> (i32, i32) {
    %c0_i32 = arith.constant 0 : i32
    %c0_i32_0 = arith.constant 0 : i32
    %c0_i32_1 = arith.constant 0 : i32
    return %c0_i32, %c0_i32_0 : i32, i32
  }
  func.func @transform_5(%arg0: i32) -> (i32, i32) {
    %c0_i32 = arith.constant 0 : i32
    %c0_i32_0 = arith.constant 0 : i32
    %c0_i32_1 = arith.constant 0 : i32
    return %c0_i32, %c0_i32_0 : i32, i32
  }
  func.func @transform_6(%arg0: i32) -> (i32, i32) {
    %c0_i32 = arith.constant 0 : i32
    %c0_i32_0 = arith.constant 0 : i32
    %c0_i32_1 = arith.constant 0 : i32
    return %c0_i32, %c0_i32_0 : i32, i32
  }
  func.func @transform_7(%arg0: i32) -> (i32, i32) {
    %c0_i32 = arith.constant 0 : i32
    %c0_i32_0 = arith.constant 0 : i32
    %c0_i32_1 = arith.constant 0 : i32
    return %c0_i32, %c0_i32_0 : i32, i32
  }
  func.func @transform_8(%arg0: i32) -> (i32, i32) {
    %c0_i32 = arith.constant 0 : i32
    %c0_i32_0 = arith.constant 0 : i32
    %c0_i32_1 = arith.constant 0 : i32
    return %c0_i32, %c0_i32_0 : i32, i32
  }
  func.func @transform_9(%arg0: i32) -> (i32, i32) {
    %c0_i32 = arith.constant 0 : i32
    %c0_i32_0 = arith.constant 0 : i32
    return %arg0, %c0_i32 : i32, i32
  }
}

</mosaic_0001>

<llo_original>
// kernel: dqn_forward.1
$region0: #{dqn_forward.1}
  #allocation0 [shape = 'u32[]', space=smem, size = 0x4, offset = 0x4, fixed_abs, tag = 'smem constant byte address 0x4 - core index']
  #allocation1 [shape = 'u32[72,128]{1,0:T(1,128)}', space=vmem, size = 0x9000, scoped, tag = 'internal scratch']
  %s0 = inlined_call_operand.vmem [shape: f32[8,256], index: 0, kind: input, shape index: {}]
  %s1 = inlined_call_operand.vmem [shape: f32[256,128], index: 1, kind: input, shape index: {}]
  %s2 = inlined_call_operand.vmem [shape: f32[1,128], index: 2, kind: input, shape index: {}]
  %s3 = inlined_call_operand.vmem [shape: f32[128,256], index: 3, kind: input, shape index: {}]
  %s4 = inlined_call_operand.vmem [shape: f32[1,256], index: 4, kind: input, shape index: {}]
  %s5 = inlined_call_operand.vmem [shape: f32[256,128], index: 5, kind: input, shape index: {}]
  %s6 = inlined_call_operand.vmem [shape: f32[1,128], index: 6, kind: input, shape index: {}]
  %s7 = inlined_call_operand.vmem [shape: f32[128,32], index: 7, kind: input, shape index: {}]
  %s8 = inlined_call_operand.vmem [shape: f32[1,32], index: 8, kind: input, shape index: {}]
  %s9 = inlined_call_operand.vmem [shape: f32[8,32], index: 9, kind: output, shape index: {}]
  %s10 = sld [smem:[#allocation0]]
  $region46: #{dqn_forward.1} parent=0
    _
  %s12 = ssub.s32 1, %s10
  %s13 = scalar_select 0, %s12, %s10
  // Predicated region
  $region2: #{dqn_forward.1} parent=0 // pred_check
    _
  $region3: #{dqn_forward.1} parent=0 // pred_check_branch
    %15 = sbr.rel (0) target = $region5
  $region4: #{dqn_forward.1} parent=0 // pred_region
    _
  $region5: #{dqn_forward.1} parent=0 // pred_fallthru
    _
  // Predicated region
  $region6: #{dqn_forward.1} parent=0 // pred_check
    _
  $region7: #{dqn_forward.1} parent=0 // pred_check_branch
    %17 = sbr.rel (0) target = $region9
  $region8: #{dqn_forward.1} parent=0 // pred_region
    _
  $region9: #{dqn_forward.1} parent=0 // pred_fallthru
    _
  // Predicated region
  $region10: #{dqn_forward.1} parent=0 // pred_check
    _
  $region11: #{dqn_forward.1} parent=0 // pred_check_branch
    %19 = sbr.rel (0) target = $region13
  $region12: #{dqn_forward.1} parent=0 // pred_region
    _
  $region13: #{dqn_forward.1} parent=0 // pred_fallthru
    _
  // Predicated region
  $region14: #{dqn_forward.1} parent=0 // pred_check
    _
  $region15: #{dqn_forward.1} parent=0 // pred_check_branch
    %21 = sbr.rel (0) target = $region17
  $region16: #{dqn_forward.1} parent=0 // pred_region
    _
  $region17: #{dqn_forward.1} parent=0 // pred_fallthru
    _
  // Predicated region
  $region18: #{dqn_forward.1} parent=0 // pred_check
    _
  $region19: #{dqn_forward.1} parent=0 // pred_check_branch
    %23 = sbr.rel (0) target = $region21
  $region20: #{dqn_forward.1} parent=0 // pred_region
    _
  $region21: #{dqn_forward.1} parent=0 // pred_fallthru
    _
  // Predicated region
  $region22: #{dqn_forward.1} parent=0 // pred_check
    _
  $region23: #{dqn_forward.1} parent=0 // pred_check_branch
    %25 = sbr.rel (0) target = $region25
  $region24: #{dqn_forward.1} parent=0 // pred_region
    _
  $region25: #{dqn_forward.1} parent=0 // pred_fallthru
    _
  // Predicated region
  $region26: #{dqn_forward.1} parent=0 // pred_check
    _
  $region27: #{dqn_forward.1} parent=0 // pred_check_branch
    %27 = sbr.rel (0) target = $region29
  $region28: #{dqn_forward.1} parent=0 // pred_region
    _
  $region29: #{dqn_forward.1} parent=0 // pred_fallthru
    _
  // Predicated region
  $region30: #{dqn_forward.1} parent=0 // pred_check
    _
  $region31: #{dqn_forward.1} parent=0 // pred_check_branch
    %29 = sbr.rel (0) target = $region33
  $region32: #{dqn_forward.1} parent=0 // pred_region
    _
  $region33: #{dqn_forward.1} parent=0 // pred_fallthru
    _
  // Predicated region
  $region34: #{dqn_forward.1} parent=0 // pred_check
    _
  $region35: #{dqn_forward.1} parent=0 // pred_check_branch
    %31 = sbr.rel (0) target = $region37
  $region36: #{dqn_forward.1} parent=0 // pred_region
    _
  $region37: #{dqn_forward.1} parent=0 // pred_fallthru
    _
  %v32 = vld [vmem:[%s0] sm:$0xff]
  %v33 = vld [vmem:[%s0 + $0x8] sm:$0xff]
  %v34 = vld [vmem:[%s1] sm:$0xff]
  %v35 = vld [vmem:[%s1 + $0x8] sm:$0xff]
  %v36 = vld [vmem:[%s1 + $0x10] sm:$0xff]
  %v37 = vld [vmem:[%s1 + $0x18] sm:$0xff]
  %v38 = vld [vmem:[%s1 + $0x20] sm:$0xff]
  %v39 = vld [vmem:[%s1 + $0x28] sm:$0xff]
  %v40 = vld [vmem:[%s1 + $0x30] sm:$0xff]
  %v41 = vld [vmem:[%s1 + $0x38] sm:$0xff]
  %v42 = vld [vmem:[%s1 + $0x40] sm:$0xff]
  %v43 = vld [vmem:[%s1 + $0x48] sm:$0xff]
  %v44 = vld [vmem:[%s1 + $0x50] sm:$0xff]
  %v45 = vld [vmem:[%s1 + $0x58] sm:$0xff]
  %v46 = vld [vmem:[%s1 + $0x60] sm:$0xff]
  %v47 = vld [vmem:[%s1 + $0x68] sm:$0xff]
  %v48 = vld [vmem:[%s1 + $0x70] sm:$0xff]
  %v49 = vld [vmem:[%s1 + $0x78] sm:$0xff]
  %v50 = vld [vmem:[%s1 + $0x80] sm:$0xff]
  %v51 = vld [vmem:[%s1 + $0x88] sm:$0xff]
  %v52 = vld [vmem:[%s1 + $0x90] sm:$0xff]
  %v53 = vld [vmem:[%s1 + $0x98] sm:$0xff]
  %v54 = vld [vmem:[%s1 + $0xa0] sm:$0xff]
  %v55 = vld [vmem:[%s1 + $0xa8] sm:$0xff]
  %v56 = vld [vmem:[%s1 + $0xb0] sm:$0xff]
  %v57 = vld [vmem:[%s1 + $0xb8] sm:$0xff]
  %v58 = vld [vmem:[%s1 + $0xc0] sm:$0xff]
  %v59 = vld [vmem:[%s1 + $0xc8] sm:$0xff]
  %v60 = vld [vmem:[%s1 + $0xd0] sm:$0xff]
  %v61 = vld [vmem:[%s1 + $0xd8] sm:$0xff]
  %v62 = vld [vmem:[%s1 + $0xe0] sm:$0xff]
  %v63 = vld [vmem:[%s1 + $0xe8] sm:$0xff]
  %v64 = vld [vmem:[%s1 + $0xf0] sm:$0xff]
  %v65 = vld [vmem:[%s1 + $0xf8] sm:$0xff]
  %v66 = vld [vmem:[%s2] sm:$0x1]
  %v68 = vperm.slane %v66, 0
  %70 = vmatpush.msra.mxu0 %v49
  %71 = vmatpush.msra.mxu0 %v48
  %72 = vmatpush.msra.mxu0 %v47
  %73 = vmatpush.msra.mxu0 %v46
  %74 = vmatpush.msra.mxu0 %v45
  %75 = vmatpush.msra.mxu0 %v44
  %76 = vmatpush.msra.mxu0 %v43
  %77 = vmatpush.msra.mxu0 %v42
  %78 = vmatpush.msra.mxu0 %v41
  %79 = vmatpush.msra.mxu0 %v40
  %80 = vmatpush.msra.mxu0 %v39
  %81 = vmatpush.msra.mxu0 %v38
  %82 = vmatpush.msra.mxu0 %v37
  %83 = vmatpush.msra.mxu0 %v36
  %84 = vmatpush.msra.mxu0 %v35
  %85 = vmatpush.msra.mxu0 %v34
  %86 = vmatmul.f32.gmra.mxu0 %v32
  %v87 = vpop.f32.mrf.mxu0
  %v88 = vadd.f32 %v68, %v87
  %89 = vdwg.mxu0
  %90 = vmatpush.msra.mxu0 %v65
  %91 = vmatpush.msra.mxu0 %v64
  %92 = vmatpush.msra.mxu0 %v63
  %93 = vmatpush.msra.mxu0 %v62
  %94 = vmatpush.msra.mxu0 %v61
  %95 = vmatpush.msra.mxu0 %v60
  %96 = vmatpush.msra.mxu0 %v59
  %97 = vmatpush.msra.mxu0 %v58
  %98 = vmatpush.msra.mxu0 %v57
  %99 = vmatpush.msra.mxu0 %v56
  %100 = vmatpush.msra.mxu0 %v55
  %101 = vmatpush.msra.mxu0 %v54
  %102 = vmatpush.msra.mxu0 %v53
  %103 = vmatpush.msra.mxu0 %v52
  %104 = vmatpush.msra.mxu0 %v51
  %105 = vmatpush.msra.mxu0 %v50
  %106 = vmatmul.f32.gmra.mxu0 %v33
  %v107 = vpop.f32.mrf.mxu0
  %v108 = vadd.f32 %v88, %v107
  %109 = vdwg.mxu0
  %v110 = vmax.f32 %v108, 0.0
  %v111 = vld [vmem:[%s3] sm:$0xff]
  %v112 = vld [vmem:[%s3 + $0x8] sm:$0xff]
  %v113 = vld [vmem:[%s3 + $0x10] sm:$0xff]
  %v114 = vld [vmem:[%s3 + $0x18] sm:$0xff]
  %v115 = vld [vmem:[%s3 + $0x20] sm:$0xff]
  %v116 = vld [vmem:[%s3 + $0x28] sm:$0xff]
  %v117 = vld [vmem:[%s3 + $0x30] sm:$0xff]
  %v118 = vld [vmem:[%s3 + $0x38] sm:$0xff]
  %v119 = vld [vmem:[%s3 + $0x40] sm:$0xff]
  %v120 = vld [vmem:[%s3 + $0x48] sm:$0xff]
  %v121 = vld [vmem:[%s3 + $0x50] sm:$0xff]
  %v122 = vld [vmem:[%s3 + $0x58] sm:$0xff]
  %v123 = vld [vmem:[%s3 + $0x60] sm:$0xff]
  %v124 = vld [vmem:[%s3 + $0x68] sm:$0xff]
  %v125 = vld [vmem:[%s3 + $0x70] sm:$0xff]
  %v126 = vld [vmem:[%s3 + $0x78] sm:$0xff]
  %v127 = vld [vmem:[%s3 + $0x80] sm:$0xff]
  %v128 = vld [vmem:[%s3 + $0x88] sm:$0xff]
  %v129 = vld [vmem:[%s3 + $0x90] sm:$0xff]
  %v130 = vld [vmem:[%s3 + $0x98] sm:$0xff]
  %v131 = vld [vmem:[%s3 + $0xa0] sm:$0xff]
  %v132 = vld [vmem:[%s3 + $0xa8] sm:$0xff]
  %v133 = vld [vmem:[%s3 + $0xb0] sm:$0xff]
  %v134 = vld [vmem:[%s3 + $0xb8] sm:$0xff]
  %v135 = vld [vmem:[%s3 + $0xc0] sm:$0xff]
  %v136 = vld [vmem:[%s3 + $0xc8] sm:$0xff]
  %v137 = vld [vmem:[%s3 + $0xd0] sm:$0xff]
  %v138 = vld [vmem:[%s3 + $0xd8] sm:$0xff]
  %v139 = vld [vmem:[%s3 + $0xe0] sm:$0xff]
  %v140 = vld [vmem:[%s3 + $0xe8] sm:$0xff]
  %v141 = vld [vmem:[%s3 + $0xf0] sm:$0xff]
  %v142 = vld [vmem:[%s3 + $0xf8] sm:$0xff]
  %v143 = vld [vmem:[%s4] sm:$0x3]
  %v145 = vperm.slane %v143, 0
  %v146 = vperm.slane %v143, 1
  %149 = vmatpush.msra.mxu0 %v141
  %150 = vmatpush.msra.mxu0 %v139
  %151 = vmatpush.msra.mxu0 %v137
  %152 = vmatpush.msra.mxu0 %v135
  %153 = vmatpush.msra.mxu0 %v133
  %154 = vmatpush.msra.mxu0 %v131
  %155 = vmatpush.msra.mxu0 %v129
  %156 = vmatpush.msra.mxu0 %v127
  %157 = vmatpush.msra.mxu0 %v125
  %158 = vmatpush.msra.mxu0 %v123
  %159 = vmatpush.msra.mxu0 %v121
  %160 = vmatpush.msra.mxu0 %v119
  %161 = vmatpush.msra.mxu0 %v117
  %162 = vmatpush.msra.mxu0 %v115
  %163 = vmatpush.msra.mxu0 %v113
  %164 = vmatpush.msra.mxu0 %v111
  %165 = vmatmul.f32.gmra.mxu0 %v110
  %v166 = vpop.f32.mrf.mxu0
  %v167 = vadd.f32 %v145, %v166
  %168 = vdwg.mxu0
  %169 = vmatpush.msra.mxu0 %v142
  %170 = vmatpush.msra.mxu0 %v140
  %171 = vmatpush.msra.mxu0 %v138
  %172 = vmatpush.msra.mxu0 %v136
  %173 = vmatpush.msra.mxu0 %v134
  %174 = vmatpush.msra.mxu0 %v132
  %175 = vmatpush.msra.mxu0 %v130
  %176 = vmatpush.msra.mxu0 %v128
  %177 = vmatpush.msra.mxu0 %v126
  %178 = vmatpush.msra.mxu0 %v124
  %179 = vmatpush.msra.mxu0 %v122
  %180 = vmatpush.msra.mxu0 %v120
  %181 = vmatpush.msra.mxu0 %v118
  %182 = vmatpush.msra.mxu0 %v116
  %183 = vmatpush.msra.mxu0 %v114
  %184 = vmatpush.msra.mxu0 %v112
  %185 = vmatmul.f32.gmra.mxu0 %v110
  %v186 = vpop.f32.mrf.mxu0
  %v187 = vadd.f32 %v146, %v186
  %188 = vdwg.mxu0
  %v189 = vmax.f32 %v167, 0.0
  %v190 = vmax.f32 %v187, 0.0
  %v191 = vld [vmem:[%s5] sm:$0xff]
  %v192 = vld [vmem:[%s5 + $0x8] sm:$0xff]
  %v193 = vld [vmem:[%s5 + $0x10] sm:$0xff]
  %v194 = vld [vmem:[%s5 + $0x18] sm:$0xff]
  %v195 = vld [vmem:[%s5 + $0x20] sm:$0xff]
  %v196 = vld [vmem:[%s5 + $0x28] sm:$0xff]
  %v197 = vld [vmem:[%s5 + $0x30] sm:$0xff]
  %v198 = vld [vmem:[%s5 + $0x38] sm:$0xff]
  %v199 = vld [vmem:[%s5 + $0x40] sm:$0xff]
  %v200 = vld [vmem:[%s5 + $0x48] sm:$0xff]
  %v201 = vld [vmem:[%s5 + $0x50] sm:$0xff]
  %v202 = vld [vmem:[%s5 + $0x58] sm:$0xff]
  %v203 = vld [vmem:[%s5 + $0x60] sm:$0xff]
  %v204 = vld [vmem:[%s5 + $0x68] sm:$0xff]
  %v205 = vld [vmem:[%s5 + $0x70] sm:$0xff]
  %v206 = vld [vmem:[%s5 + $0x78] sm:$0xff]
  %v207 = vld [vmem:[%s5 + $0x80] sm:$0xff]
  %v208 = vld [vmem:[%s5 + $0x88] sm:$0xff]
  %v209 = vld [vmem:[%s5 + $0x90] sm:$0xff]
  %v210 = vld [vmem:[%s5 + $0x98] sm:$0xff]
  %v211 = vld [vmem:[%s5 + $0xa0] sm:$0xff]
  %v212 = vld [vmem:[%s5 + $0xa8] sm:$0xff]
  %v213 = vld [vmem:[%s5 + $0xb0] sm:$0xff]
  %v214 = vld [vmem:[%s5 + $0xb8] sm:$0xff]
  %v215 = vld [vmem:[%s5 + $0xc0] sm:$0xff]
  %v216 = vld [vmem:[%s5 + $0xc8] sm:$0xff]
  %v217 = vld [vmem:[%s5 + $0xd0] sm:$0xff]
  %v218 = vld [vmem:[%s5 + $0xd8] sm:$0xff]
  %v219 = vld [vmem:[%s5 + $0xe0] sm:$0xff]
  %v220 = vld [vmem:[%s5 + $0xe8] sm:$0xff]
  %v221 = vld [vmem:[%s5 + $0xf0] sm:$0xff]
  %v222 = vld [vmem:[%s5 + $0xf8] sm:$0xff]
  %v223 = vld [vmem:[%s6] sm:$0x1]
  %v225 = vperm.slane %v223, 0
  %227 = vmatpush.msra.mxu0 %v206
  %228 = vmatpush.msra.mxu0 %v205
  %229 = vmatpush.msra.mxu0 %v204
  %230 = vmatpush.msra.mxu0 %v203
  %231 = vmatpush.msra.mxu0 %v202
  %232 = vmatpush.msra.mxu0 %v201
  %233 = vmatpush.msra.mxu0 %v200
  %234 = vmatpush.msra.mxu0 %v199
  %235 = vmatpush.msra.mxu0 %v198
  %236 = vmatpush.msra.mxu0 %v197
  %237 = vmatpush.msra.mxu0 %v196
  %238 = vmatpush.msra.mxu0 %v195
  %239 = vmatpush.msra.mxu0 %v194
  %240 = vmatpush.msra.mxu0 %v193
  %241 = vmatpush.msra.mxu0 %v192
  %242 = vmatpush.msra.mxu0 %v191
  %243 = vmatmul.f32.gmra.mxu0 %v189
  %v244 = vpop.f32.mrf.mxu0
  %v245 = vadd.f32 %v225, %v244
  %246 = vdwg.mxu0
  %247 = vmatpush.msra.mxu0 %v222
  %248 = vmatpush.msra.mxu0 %v221
  %249 = vmatpush.msra.mxu0 %v220
  %250 = vmatpush.msra.mxu0 %v219
  %251 = vmatpush.msra.mxu0 %v218
  %252 = vmatpush.msra.mxu0 %v217
  %253 = vmatpush.msra.mxu0 %v216
  %254 = vmatpush.msra.mxu0 %v215
  %255 = vmatpush.msra.mxu0 %v214
  %256 = vmatpush.msra.mxu0 %v213
  %257 = vmatpush.msra.mxu0 %v212
  %258 = vmatpush.msra.mxu0 %v211
  %259 = vmatpush.msra.mxu0 %v210
  %260 = vmatpush.msra.mxu0 %v209
  %261 = vmatpush.msra.mxu0 %v208
  %262 = vmatpush.msra.mxu0 %v207
  %263 = vmatmul.f32.gmra.mxu0 %v190
  %v264 = vpop.f32.mrf.mxu0
  %v265 = vadd.f32 %v245, %v264
  %266 = vdwg.mxu0
  %v267 = vmax.f32 %v265, 0.0
  %v268 = vld [vmem:[%s7] sm:$0xff]
  %v269 = vld [vmem:[%s7 + $0x8] sm:$0xff]
  %v270 = vld [vmem:[%s7 + $0x10] sm:$0xff]
  %v271 = vld [vmem:[%s7 + $0x18] sm:$0xff]
  %v272 = vld [vmem:[%s7 + $0x20] sm:$0xff]
  %v273 = vld [vmem:[%s7 + $0x28] sm:$0xff]
  %v274 = vld [vmem:[%s7 + $0x30] sm:$0xff]
  %v275 = vld [vmem:[%s7 + $0x38] sm:$0xff]
  %v276 = vld [vmem:[%s7 + $0x40] sm:$0xff]
  %v277 = vld [vmem:[%s7 + $0x48] sm:$0xff]
  %v278 = vld [vmem:[%s7 + $0x50] sm:$0xff]
  %v279 = vld [vmem:[%s7 + $0x58] sm:$0xff]
  %v280 = vld [vmem:[%s7 + $0x60] sm:$0xff]
  %v281 = vld [vmem:[%s7 + $0x68] sm:$0xff]
  %v282 = vld [vmem:[%s7 + $0x70] sm:$0xff]
  %v283 = vld [vmem:[%s7 + $0x78] sm:$0xff]
  %v284 = vld [vmem:[%s8] sm:$0x1]
  %v286 = vperm.slane %v284, 0
  %288 = vmatpush.msra.mxu0 %v283
  %289 = vmatpush.msra.mxu0 %v282
  %290 = vmatpush.msra.mxu0 %v281
  %291 = vmatpush.msra.mxu0 %v280
  %292 = vmatpush.msra.mxu0 %v279
  %293 = vmatpush.msra.mxu0 %v278
  %294 = vmatpush.msra.mxu0 %v277
  %295 = vmatpush.msra.mxu0 %v276
  %296 = vmatpush.msra.mxu0 %v275
  %297 = vmatpush.msra.mxu0 %v274
  %298 = vmatpush.msra.mxu0 %v273
  %299 = vmatpush.msra.mxu0 %v272
  %300 = vmatpush.msra.mxu0 %v271
  %301 = vmatpush.msra.mxu0 %v270
  %302 = vmatpush.msra.mxu0 %v269
  %303 = vmatpush.msra.mxu0 %v268
  %304 = vmatmul.f32.gmra.mxu0 %v267
  %v305 = vpop.f32.mrf.mxu0
  %v306 = vadd.f32 %v286, %v305
  %307 = vdwg.mxu0
  %vm308 = vcmask 261120
  %309 = vst.msk [vmem:[%s9] sm:$0xff] %vm308, %v306
  // Predicated region
  $region38: #{dqn_forward.1} parent=0 // pred_check
    _
  $region39: #{dqn_forward.1} parent=0 // pred_check_branch
    %311 = sbr.rel (0) target = $region41
  $region40: #{dqn_forward.1} parent=0 // pred_region
    _
  $region41: #{dqn_forward.1} parent=0 // pred_fallthru
    _
  // Predicated region
  $region42: #{dqn_forward.1} parent=0 // pred_check
    _
  $region43: #{dqn_forward.1} parent=0 // pred_check_branch
    %313 = sbr.rel (0) target = $region45
  $region44: #{dqn_forward.1} parent=0 // pred_region
    _
  $region45: #{dqn_forward.1} parent=0 // pred_fallthru
    _

</llo_original>
